<compile_context>
chip_gen: v7x
topology: tpu7x:2x2x1
jax: 0.10.0
libtpu: 0.0.40
codegen_flags: <defaults>
</compile_context>

<pallas_src>
import functools

import jax
import jax.numpy as jnp
from jax.experimental import pallas as pl
from jax.experimental.pallas import tpu as pltpu


LN_EPS = 1e-5  # torch.nn.LayerNorm default eps


def _round_up(a, m):
    return ((a + m - 1) // m) * m


def _make_pprm_kernel(H, Hp, Tp):
    """Build the fused PPRM kernel for static (H, Hp, Tp)."""
    inv_h = 1.0 / float(H)

    def kernel(x_ref, w1g_ref, b1g_ref, gamma_ref, beta_ref, w2_ref, b2_ref, out_ref):
        # x_ref : (TILE_M, Hp) f32 -- columns [0,H) are features, column H is x_last,
        #                            remaining padded columns are zero.
        x = x_ref[...]

        col = jax.lax.broadcasted_iota(jnp.int32, (1, Hp), 1)
        h_mask = (col < H).astype(jnp.float32)        # real hidden columns
        xl_mask = (col == H).astype(jnp.float32)      # x_last column selector

        # ---- fused matmul against [w1 | wg]  ->  (TILE_M, Hp + Tp), f32 accumulation.
        xm = x.astype(w1g_ref.dtype)                  # bf16 or f32 MXU operands
        hz = jnp.dot(xm, w1g_ref[...], preferred_element_type=jnp.float32) + b1g_ref[...]
        h = hz[:, :Hp]                                # predictor hidden (padded cols == 0)
        g_logits = hz[:, Hp:]                         # refine-gate logits

        # ---- LayerNorm over the real H columns (padded h columns are exactly zero,
        #      so the plain sum already covers only the real features).
        mean = jnp.sum(h, axis=-1, keepdims=True) * inv_h
        cent = (h - mean) * h_mask
        var = jnp.sum(cent * cent, axis=-1, keepdims=True) * inv_h
        h_norm = cent * jax.lax.rsqrt(var + LN_EPS) * gamma_ref[...] + beta_ref[...]
        h_act = jnp.maximum(h_norm, 0.0)
        # Dropout: identity in eval mode.

        # ---- second predictor Linear (MXU) + gate sigmoid (EUP).
        preds = jnp.dot(h_act.astype(w2_ref.dtype), w2_ref[...],
                        preferred_element_type=jnp.float32) + b2_ref[...]
        gates = jax.nn.sigmoid(g_logits)

        # ---- refinement: gates * x_last + (1 - gates) * preds
        x_last = jnp.sum(x * xl_mask, axis=-1, keepdims=True)   # (TILE_M, 1), exact f32
        out_ref[...] = (gates * x_last + (1.0 - gates) * preds).astype(out_ref.dtype)

    return kernel


@functools.partial(jax.jit, static_argnames=("matmul_dtype", "tile_m"))
def pprm_forward(x, x_last, params, *, matmul_dtype=jnp.float32, tile_m=512):
    """x: (B, N, H) f32, x_last: (B, N) f32 -> (B, N, horizon) f32."""
    B, N, H = x.shape
    T = params["w2"].shape[1]
    M = B * N

    Hp = _round_up(H + 1, 128)     # +1 spare (padded) column carries x_last
    Tp = _round_up(T, 128)         # lane-dense output

    # ---- pick a row tile that fits comfortably in VMEM (v7x: 64 MiB physical).
    w_bytes = jnp.dtype(matmul_dtype).itemsize

    def vmem_need(tm):
        tiles = 2 * tm * Hp * 4 + 2 * tm * Tp * 4                       # double-buffered x / out
        weights = 2 * (Hp * (Hp + Tp) * w_bytes + Hp * Tp * w_bytes     # resident weights
                       + (Hp + Tp) * 4 + 2 * Hp * 4 + Tp * 4)
        return tiles + weights

    TILE_M = _round_up(min(tile_m, _round_up(M, 8)), 8)
    while TILE_M > 8 and vmem_need(TILE_M) > 24 * 1024 * 1024:
        TILE_M = max(8, TILE_M // 2)
    Mp = _round_up(M, TILE_M)
    vmem_limit = int(min(max(2 * vmem_need(TILE_M), 16 * 1024 * 1024), 48 * 1024 * 1024))

    # ---- pack / pad inputs and parameters (layout plumbing, done once per call).
    x2 = jnp.zeros((Mp, Hp), jnp.float32)
    x2 = x2.at[:M, :H].set(x.reshape(M, H).astype(jnp.float32))
    x2 = x2.at[:M, H].set(x_last.reshape(M).astype(jnp.float32))

    w1g = jnp.zeros((Hp, Hp + Tp), jnp.float32)
    w1g = w1g.at[:H, :H].set(params["w1"]).at[:H, Hp:Hp + T].set(params["wg"])
    w1g = w1g.astype(matmul_dtype)

    b1g = jnp.zeros((1, Hp + Tp), jnp.float32)
    b1g = b1g.at[:, :H].set(params["b1"]).at[:, Hp:Hp + T].set(params["bg"])

    gamma_p = jnp.zeros((1, Hp), jnp.float32).at[:, :H].set(params["gamma"])
    beta_p = jnp.zeros((1, Hp), jnp.float32).at[:, :H].set(params["beta"])

    w2p = jnp.zeros((Hp, Tp), jnp.float32).at[:H, :T].set(params["w2"]).astype(matmul_dtype)
    b2p = jnp.zeros((1, Tp), jnp.float32).at[:, :T].set(params["b2"])

    kernel = _make_pprm_kernel(H, Hp, Tp)
    grid = (Mp // TILE_M,)

    row_spec = pl.BlockSpec((TILE_M, Hp), lambda i: (i, 0))
    out_spec = pl.BlockSpec((TILE_M, Tp), lambda i: (i, 0))

    def resident(shape):
        # Full-array block with a constant index_map: stays resident in VMEM.
        return pl.BlockSpec(shape, lambda i: (0, 0))

    cost = pl.CostEstimate(
        flops=2 * Mp * Hp * (Hp + Tp) + 2 * Mp * Hp * Tp,
        transcendentals=Mp * (Tp + 1),
        bytes_accessed=Mp * Hp * 4 + Mp * Tp * 4
        + (Hp * (Hp + Tp) + Hp * Tp) * w_bytes + (Hp + Tp + 2 * Hp + Tp) * 4,
    )

    out = pl.pallas_call(
        kernel,
        out_shape=jax.ShapeDtypeStruct((Mp, Tp), jnp.float32),
        grid=grid,
        in_specs=[
            row_spec,                          # x slab (features + x_last column)
            resident((Hp, Hp + Tp)),           # fused [w1 | wg]
            resident((1, Hp + Tp)),            # fused [b1 | bg]
            resident((1, Hp)),                 # LayerNorm gamma
            resident((1, Hp)),                 # LayerNorm beta
            resident((Hp, Tp)),                # w2
            resident((1, Tp)),                 # b2
        ],
        out_specs=out_spec,
        compiler_params=pltpu.CompilerParams(
            dimension_semantics=("parallel",),
            vmem_limit_bytes=vmem_limit,
        ),
        cost_estimate=cost,
    )(x2, w1g, b1g, gamma_p, beta_p, w2p, b2p)

    return out[:M, :T].reshape(B, N, T)


def init_params(key, hidden_dim, horizon):
    """Deterministic synthetic parameters matching the PyTorch module's shapes."""
    ks = jax.random.split(key, 6)
    scale1 = 1.0 / jnp.sqrt(hidden_dim)
    w1 = jax.random.uniform(ks[0], (hidden_dim, hidden_dim), jnp.float32, -scale1, scale1)
    b1 = jax.random.uniform(ks[1], (1, hidden_dim), jnp.float32, -scale1, scale1)
    gamma = jnp.ones((1, hidden_dim), jnp.float32)
    beta = jnp.zeros((1, hidden_dim), jnp.float32)
    w2 = jax.random.uniform(ks[2], (hidden_dim, horizon), jnp.float32, -scale1, scale1)
    b2 = jax.random.uniform(ks[3], (1, horizon), jnp.float32, -scale1, scale1)
    wg = jax.random.uniform(ks[4], (hidden_dim, horizon), jnp.float32, -scale1, scale1)
    bg = jax.random.uniform(ks[5], (1, horizon), jnp.float32, -scale1, scale1)
    return dict(w1=w1, b1=b1, gamma=gamma, beta=beta, w2=w2, b2=b2, wg=wg, bg=bg)


def pprm_reference(x, x_last, p):
    """Pure-JAX reference of the PyTorch forward (eval mode)."""
    h = x @ p["w1"] + p["b1"][0]
    mean = h.mean(-1, keepdims=True)
    var = ((h - mean) ** 2).mean(-1, keepdims=True)
    h = (h - mean) / jnp.sqrt(var + LN_EPS) * p["gamma"][0] + p["beta"][0]
    h = jnp.maximum(h, 0.0)
    preds = h @ p["w2"] + p["b2"][0]
    gates = jax.nn.sigmoid(x @ p["wg"] + p["bg"][0])
    xl = x_last[..., None]
    return gates * xl + (1.0 - gates) * preds


if __name__ == "__main__":
    batch, num_nodes, hidden_dim, horizon = 2, 8, 32, 8

    key = jax.random.PRNGKey(0)
    k_x, k_last, k_p = jax.random.split(key, 3)
    x = jax.random.normal(k_x, (batch, num_nodes, hidden_dim), jnp.float32)
    x_last = jax.random.normal(k_last, (batch, num_nodes), jnp.float32)
    params = init_params(k_p, hidden_dim, horizon)

    ref = pprm_reference(x, x_last, params)

    # f32 MXU operands: strict check against the pure-JAX reference.
    out_f32 = jax.block_until_ready(pprm_forward(x, x_last, params))
    assert out_f32.shape == (batch, num_nodes, horizon)
    assert jnp.allclose(out_f32, ref, atol=1e-5, rtol=1e-5), "f32 kernel mismatch vs reference"

    # bf16 MXU operands (v6e/v7x fast path), f32 accumulation + f32 vector math.
    out_bf16 = jax.block_until_ready(
        pprm_forward(x, x_last, params, matmul_dtype=jnp.bfloat16))
    assert out_bf16.shape == (batch, num_nodes, horizon)
    assert jnp.allclose(out_bf16, ref, atol=1e-1, rtol=1e-1), "bf16 kernel mismatch vs reference"

    print("KERNEL_OK")
</pallas_src>

<mosaic_0001>
module attributes {stable_mosaic.version = 11 : i64} {
  func.func @kernel(%arg0: i32, %arg1: memref<16x128xf32, #tpu.memory_space<vmem>>, %arg2: memref<128x256xf32, #tpu.memory_space<vmem>>, %arg3: memref<1x256xf32, #tpu.memory_space<vmem>>, %arg4: memref<1x128xf32, #tpu.memory_space<vmem>>, %arg5: memref<1x128xf32, #tpu.memory_space<vmem>>, %arg6: memref<128x128xf32, #tpu.memory_space<vmem>>, %arg7: memref<1x128xf32, #tpu.memory_space<vmem>>, %arg8: memref<16x128xf32, #tpu.memory_space<vmem>>) attributes {dimension_semantics = [#tpu.dimension_semantics<parallel>], iteration_bounds = array<i64: 1>, scalar_prefetch = 0 : i64, scratch_operands = 0 : i64, tpu.core_type = #tpu.core_type<tc>, window_params = [{transform_indices = @transform_0, window_bounds = array<i64: 16, 128>}, {pipeline_mode = #tpu.pipeline_mode<synchronous>, transform_indices = @transform_1, window_bounds = array<i64: 128, 256>}, {pipeline_mode = #tpu.pipeline_mode<synchronous>, transform_indices = @transform_2, window_bounds = array<i64: 1, 256>}, {pipeline_mode = #tpu.pipeline_mode<synchronous>, transform_indices = @transform_3, window_bounds = array<i64: 1, 128>}, {pipeline_mode = #tpu.pipeline_mode<synchronous>, transform_indices = @transform_4, window_bounds = array<i64: 1, 128>}, {pipeline_mode = #tpu.pipeline_mode<synchronous>, transform_indices = @transform_5, window_bounds = array<i64: 128, 128>}, {pipeline_mode = #tpu.pipeline_mode<synchronous>, transform_indices = @transform_6, window_bounds = array<i64: 1, 128>}, {transform_indices = @transform_7, window_bounds = array<i64: 16, 128>}]} {
    %c0 = arith.constant 0 : index
    %c0_0 = arith.constant 0 : index
    %0 = vector.load %arg1[%c0, %c0_0] : memref<16x128xf32, #tpu.memory_space<vmem>>, vector<16x128xf32>
    %1 = tpu.iota {dimensions = array<i32: 1>} : vector<1x128xi32>
    %c32_i32 = arith.constant 32 : i32
    %2 = vector.broadcast %c32_i32 : i32 to vector<1x128xi32>
    %3 = arith.cmpi slt, %1, %2 : vector<1x128xi32>
    %4 = arith.extui %3 : vector<1x128xi1> to vector<1x128xi32>
    %5 = arith.sitofp %4 : vector<1x128xi32> to vector<1x128xf32>
    %c32_i32_1 = arith.constant 32 : i32
    %6 = vector.broadcast %c32_i32_1 : i32 to vector<1x128xi32>
    %7 = arith.cmpi eq, %1, %6 : vector<1x128xi32>
    %8 = arith.extui %7 : vector<1x128xi1> to vector<1x128xi32>
    %9 = arith.sitofp %8 : vector<1x128xi32> to vector<1x128xf32>
    %c0_2 = arith.constant 0 : index
    %c0_3 = arith.constant 0 : index
    %10 = vector.load %arg2[%c0_2, %c0_3] : memref<128x256xf32, #tpu.memory_space<vmem>>, vector<128x256xf32>
    %cst = arith.constant dense<0.000000e+00> : vector<16x256xf32>
    %11 = tpu.matmul %0, %10, %cst {dimension_numbers = #tpu.dot_dimension_numbers<[1], [0], [0], [1], [0, 0, 1, 1], [], []>} : vector<16x128xf32>, vector<128x256xf32>, vector<16x256xf32> -> vector<16x256xf32>
    %c0_4 = arith.constant 0 : index
    %c0_5 = arith.constant 0 : index
    %12 = vector.load %arg3[%c0_4, %c0_5] : memref<1x256xf32, #tpu.memory_space<vmem>>, vector<1x256xf32>
    %13 = vector.broadcast %12 : vector<1x256xf32> to vector<16x256xf32>
    %14 = arith.addf %11, %13 : vector<16x256xf32>
    %15 = vector.extract_strided_slice %14 {offsets = [0, 0], sizes = [16, 128], strides = [1, 1]} : vector<16x256xf32> to vector<16x128xf32>
    %16 = vector.extract_strided_slice %14 {offsets = [0, 128], sizes = [16, 128], strides = [1, 1]} : vector<16x256xf32> to vector<16x128xf32>
    %cst_6 = arith.constant dense<0.000000e+00> : vector<16xf32>
    %17 = vector.multi_reduction <add>, %15, %cst_6 [1] : vector<16x128xf32> to vector<16xf32>
    %18 = vector.shape_cast %17 : vector<16xf32> to vector<16x1xf32>
    %cst_7 = arith.constant 3.125000e-02 : f32
    %19 = vector.broadcast %cst_7 : f32 to vector<16x1xf32>
    %20 = arith.mulf %18, %19 : vector<16x1xf32>
    %21 = vector.broadcast %20 : vector<16x1xf32> to vector<16x128xf32>
    %22 = arith.subf %15, %21 : vector<16x128xf32>
    %23 = vector.broadcast %5 : vector<1x128xf32> to vector<16x128xf32>
    %24 = arith.mulf %22, %23 : vector<16x128xf32>
    %25 = arith.mulf %24, %24 : vector<16x128xf32>
    %cst_8 = arith.constant dense<0.000000e+00> : vector<16xf32>
    %26 = vector.multi_reduction <add>, %25, %cst_8 [1] : vector<16x128xf32> to vector<16xf32>
    %27 = vector.shape_cast %26 : vector<16xf32> to vector<16x1xf32>
    %cst_9 = arith.constant 3.125000e-02 : f32
    %28 = vector.broadcast %cst_9 : f32 to vector<16x1xf32>
    %29 = arith.mulf %27, %28 : vector<16x1xf32>
    %cst_10 = arith.constant 9.99999974E-6 : f32
    %30 = vector.broadcast %cst_10 : f32 to vector<16x1xf32>
    %31 = arith.addf %29, %30 : vector<16x1xf32>
    %32 = math.rsqrt %31 : vector<16x1xf32>
    %33 = vector.broadcast %32 : vector<16x1xf32> to vector<16x128xf32>
    %34 = arith.mulf %24, %33 : vector<16x128xf32>
    %c0_11 = arith.constant 0 : index
    %c0_12 = arith.constant 0 : index
    %35 = vector.load %arg4[%c0_11, %c0_12] : memref<1x128xf32, #tpu.memory_space<vmem>>, vector<1x128xf32>
    %36 = vector.broadcast %35 : vector<1x128xf32> to vector<16x128xf32>
    %37 = arith.mulf %34, %36 : vector<16x128xf32>
    %c0_13 = arith.constant 0 : index
    %c0_14 = arith.constant 0 : index
    %38 = vector.load %arg5[%c0_13, %c0_14] : memref<1x128xf32, #tpu.memory_space<vmem>>, vector<1x128xf32>
    %39 = vector.broadcast %38 : vector<1x128xf32> to vector<16x128xf32>
    %40 = arith.addf %37, %39 : vector<16x128xf32>
    %cst_15 = arith.constant 0.000000e+00 : f32
    %41 = vector.broadcast %cst_15 : f32 to vector<16x128xf32>
    %42 = arith.maximumf %40, %41 : vector<16x128xf32>
    %c0_16 = arith.constant 0 : index
    %c0_17 = arith.constant 0 : index
    %43 = vector.load %arg6[%c0_16, %c0_17] : memref<128x128xf32, #tpu.memory_space<vmem>>, vector<128x128xf32>
    %cst_18 = arith.constant dense<0.000000e+00> : vector<16x128xf32>
    %44 = tpu.matmul %42, %43, %cst_18 {dimension_numbers = #tpu.dot_dimension_numbers<[1], [0], [0], [1], [0, 0, 1, 1], [], []>} : vector<16x128xf32>, vector<128x128xf32>, vector<16x128xf32> -> vector<16x128xf32>
    %c0_19 = arith.constant 0 : index
    %c0_20 = arith.constant 0 : index
    %45 = vector.load %arg7[%c0_19, %c0_20] : memref<1x128xf32, #tpu.memory_space<vmem>>, vector<1x128xf32>
    %46 = vector.broadcast %45 : vector<1x128xf32> to vector<16x128xf32>
    %47 = arith.addf %44, %46 : vector<16x128xf32>
    %48 = arith.negf %16 : vector<16x128xf32>
    %49 = math.exp %48 : vector<16x128xf32>
    %cst_21 = arith.constant 1.000000e+00 : f32
    %50 = vector.broadcast %cst_21 : f32 to vector<16x128xf32>
    %51 = arith.addf %50, %49 : vector<16x128xf32>
    %52 = arith.divf %50, %51 : vector<16x128xf32>
    %53 = vector.broadcast %9 : vector<1x128xf32> to vector<16x128xf32>
    %54 = arith.mulf %0, %53 : vector<16x128xf32>
    %cst_22 = arith.constant dense<0.000000e+00> : vector<16xf32>
    %55 = vector.multi_reduction <add>, %54, %cst_22 [1] : vector<16x128xf32> to vector<16xf32>
    %56 = vector.shape_cast %55 : vector<16xf32> to vector<16x1xf32>
    %57 = vector.broadcast %56 : vector<16x1xf32> to vector<16x128xf32>
    %58 = arith.mulf %52, %57 : vector<16x128xf32>
    %cst_23 = arith.constant 1.000000e+00 : f32
    %59 = vector.broadcast %cst_23 : f32 to vector<16x128xf32>
    %60 = arith.subf %59, %52 : vector<16x128xf32>
    %61 = arith.mulf %60, %47 : vector<16x128xf32>
    %62 = arith.addf %58, %61 : vector<16x128xf32>
    %c0_24 = arith.constant 0 : index
    %c0_25 = arith.constant 0 : index
    %63 = vector.load %arg8[%c0_24, %c0_25] : memref<16x128xf32, #tpu.memory_space<vmem>>, vector<16x128xf32>
    tpu.vector_store %arg8[%c0_24, %c0_25], %62 {strides = array<i32>} : memref<16x128xf32, #tpu.memory_space<vmem>>, vector<16x128xf32>,
    return
  }
  func.func @transform_0(%arg0: i32) -> (i32, i32) {
    %c0_i32 = arith.constant 0 : i32
    %c0_i32_0 = arith.constant 0 : i32
    return %arg0, %c0_i32 : i32, i32
  }
  func.func @transform_1(%arg0: i32) -> (i32, i32) {
    %c0_i32 = arith.constant 0 : i32
    %c0_i32_0 = arith.constant 0 : i32
    %c0_i32_1 = arith.constant 0 : i32
    return %c0_i32, %c0_i32_0 : i32, i32
  }
  func.func @transform_2(%arg0: i32) -> (i32, i32) {
    %c0_i32 = arith.constant 0 : i32
    %c0_i32_0 = arith.constant 0 : i32
    %c0_i32_1 = arith.constant 0 : i32
    return %c0_i32, %c0_i32_0 : i32, i32
  }
  func.func @transform_3(%arg0: i32) -> (i32, i32) {
    %c0_i32 = arith.constant 0 : i32
    %c0_i32_0 = arith.constant 0 : i32
    %c0_i32_1 = arith.constant 0 : i32
    return %c0_i32, %c0_i32_0 : i32, i32
  }
  func.func @transform_4(%arg0: i32) -> (i32, i32) {
    %c0_i32 = arith.constant 0 : i32
    %c0_i32_0 = arith.constant 0 : i32
    %c0_i32_1 = arith.constant 0 : i32
    return %c0_i32, %c0_i32_0 : i32, i32
  }
  func.func @transform_5(%arg0: i32) -> (i32, i32) {
    %c0_i32 = arith.constant 0 : i32
    %c0_i32_0 = arith.constant 0 : i32
    %c0_i32_1 = arith.constant 0 : i32
    return %c0_i32, %c0_i32_0 : i32, i32
  }
  func.func @transform_6(%arg0: i32) -> (i32, i32) {
    %c0_i32 = arith.constant 0 : i32
    %c0_i32_0 = arith.constant 0 : i32
    %c0_i32_1 = arith.constant 0 : i32
    return %c0_i32, %c0_i32_0 : i32, i32
  }
  func.func @transform_7(%arg0: i32) -> (i32, i32) {
    %c0_i32 = arith.constant 0 : i32
    %c0_i32_0 = arith.constant 0 : i32
    return %arg0, %c0_i32 : i32, i32
  }
}

</mosaic_0001>

<llo_original>
// kernel: pprm_forward.1
$region0: #{pprm_forward.1}
  #allocation0 [shape = 'u32[]', space=smem, size = 0x4, offset = 0x4, fixed_abs, tag = 'smem constant byte address 0x4 - core index']
  #allocation1 [shape = 'u32[144,128]{1,0:T(1,128)}', space=vmem, size = 0x12000, scoped, tag = 'internal scratch']
  %s0 = inlined_call_operand.vmem [shape: f32[16,128], index: 0, kind: input, shape index: {}]
  %s1 = inlined_call_operand.vmem [shape: f32[128,256], index: 1, kind: input, shape index: {}]
  %s2 = inlined_call_operand.vmem [shape: f32[1,256], index: 2, kind: input, shape index: {}]
  %s3 = inlined_call_operand.vmem [shape: f32[1,128], index: 3, kind: input, shape index: {}]
  %s4 = inlined_call_operand.vmem [shape: f32[1,128], index: 4, kind: input, shape index: {}]
  %s5 = inlined_call_operand.vmem [shape: f32[128,128], index: 5, kind: input, shape index: {}]
  %s6 = inlined_call_operand.vmem [shape: f32[1,128], index: 6, kind: input, shape index: {}]
  %s7 = inlined_call_operand.vmem [shape: f32[16,128], index: 7, kind: output, shape index: {}]
  %s8 = sld [smem:[#allocation0]]
  $region38: #{pprm_forward.1} parent=0
    _
  %s10 = ssub.s32 1, %s8
  %s11 = scalar_select 0, %s10, %s8
  // Predicated region
  $region2: #{pprm_forward.1} parent=0 // pred_check
    _
  $region3: #{pprm_forward.1} parent=0 // pred_check_branch
    %13 = sbr.rel (0) target = $region5
  $region4: #{pprm_forward.1} parent=0 // pred_region
    _
  $region5: #{pprm_forward.1} parent=0 // pred_fallthru
    _
  // Predicated region
  $region6: #{pprm_forward.1} parent=0 // pred_check
    _
  $region7: #{pprm_forward.1} parent=0 // pred_check_branch
    %15 = sbr.rel (0) target = $region9
  $region8: #{pprm_forward.1} parent=0 // pred_region
    _
  $region9: #{pprm_forward.1} parent=0 // pred_fallthru
    _
  // Predicated region
  $region10: #{pprm_forward.1} parent=0 // pred_check
    _
  $region11: #{pprm_forward.1} parent=0 // pred_check_branch
    %17 = sbr.rel (0) target = $region13
  $region12: #{pprm_forward.1} parent=0 // pred_region
    _
  $region13: #{pprm_forward.1} parent=0 // pred_fallthru
    _
  // Predicated region
  $region14: #{pprm_forward.1} parent=0 // pred_check
    _
  $region15: #{pprm_forward.1} parent=0 // pred_check_branch
    %19 = sbr.rel (0) target = $region17
  $region16: #{pprm_forward.1} parent=0 // pred_region
    _
  $region17: #{pprm_forward.1} parent=0 // pred_fallthru
    _
  // Predicated region
  $region18: #{pprm_forward.1} parent=0 // pred_check
    _
  $region19: #{pprm_forward.1} parent=0 // pred_check_branch
    %21 = sbr.rel (0) target = $region21
  $region20: #{pprm_forward.1} parent=0 // pred_region
    _
  $region21: #{pprm_forward.1} parent=0 // pred_fallthru
    _
  // Predicated region
  $region22: #{pprm_forward.1} parent=0 // pred_check
    _
  $region23: #{pprm_forward.1} parent=0 // pred_check_branch
    %23 = sbr.rel (0) target = $region25
  $region24: #{pprm_forward.1} parent=0 // pred_region
    _
  $region25: #{pprm_forward.1} parent=0 // pred_fallthru
    _
  // Predicated region
  $region26: #{pprm_forward.1} parent=0 // pred_check
    _
  $region27: #{pprm_forward.1} parent=0 // pred_check_branch
    %25 = sbr.rel (0) target = $region29
  $region28: #{pprm_forward.1} parent=0 // pred_region
    _
  $region29: #{pprm_forward.1} parent=0 // pred_fallthru
    _
  %v26 = vld [vmem:[%s0] sm:$0xff]
  %v27 = vld [vmem:[%s0 + $0x8] sm:$0xff]
  %v28 = vlaneseq
  %v29 = vand.u32 %v28, 127
  %vm30 = vcmp.lt.s32.totalorder %v29, 32
  %v31 = vsel %vm30, 1, 0
  %v32 = vcvt.s32.f32 %v31
  %vm33 = vcmp.eq.s32.totalorder %v29, 32
  %v34 = vsel %vm33, 1, 0
  %v35 = vcvt.s32.f32 %v34
  %v36 = vld [vmem:[%s1] sm:$0xff]
  %v37 = vld [vmem:[%s1 + $0x8] sm:$0xff]
  %v38 = vld [vmem:[%s1 + $0x10] sm:$0xff]
  %v39 = vld [vmem:[%s1 + $0x18] sm:$0xff]
  %v40 = vld [vmem:[%s1 + $0x20] sm:$0xff]
  %v41 = vld [vmem:[%s1 + $0x28] sm:$0xff]
  %v42 = vld [vmem:[%s1 + $0x30] sm:$0xff]
  %v43 = vld [vmem:[%s1 + $0x38] sm:$0xff]
  %v44 = vld [vmem:[%s1 + $0x40] sm:$0xff]
  %v45 = vld [vmem:[%s1 + $0x48] sm:$0xff]
  %v46 = vld [vmem:[%s1 + $0x50] sm:$0xff]
  %v47 = vld [vmem:[%s1 + $0x58] sm:$0xff]
  %v48 = vld [vmem:[%s1 + $0x60] sm:$0xff]
  %v49 = vld [vmem:[%s1 + $0x68] sm:$0xff]
  %v50 = vld [vmem:[%s1 + $0x70] sm:$0xff]
  %v51 = vld [vmem:[%s1 + $0x78] sm:$0xff]
  %v52 = vld [vmem:[%s1 + $0x80] sm:$0xff]
  %v53 = vld [vmem:[%s1 + $0x88] sm:$0xff]
  %v54 = vld [vmem:[%s1 + $0x90] sm:$0xff]
  %v55 = vld [vmem:[%s1 + $0x98] sm:$0xff]
  %v56 = vld [vmem:[%s1 + $0xa0] sm:$0xff]
  %v57 = vld [vmem:[%s1 + $0xa8] sm:$0xff]
  %v58 = vld [vmem:[%s1 + $0xb0] sm:$0xff]
  %v59 = vld [vmem:[%s1 + $0xb8] sm:$0xff]
  %v60 = vld [vmem:[%s1 + $0xc0] sm:$0xff]
  %v61 = vld [vmem:[%s1 + $0xc8] sm:$0xff]
  %v62 = vld [vmem:[%s1 + $0xd0] sm:$0xff]
  %v63 = vld [vmem:[%s1 + $0xd8] sm:$0xff]
  %v64 = vld [vmem:[%s1 + $0xe0] sm:$0xff]
  %v65 = vld [vmem:[%s1 + $0xe8] sm:$0xff]
  %v66 = vld [vmem:[%s1 + $0xf0] sm:$0xff]
  %v67 = vld [vmem:[%s1 + $0xf8] sm:$0xff]
  %v68 = vld [vmem:[%s2] sm:$0x3]
  %v70 = vlaneseq
  %v71 = vshrl.u32 %v70, 7
  %v72 = vsub.s32 0, %v71
  %v73 = vrot.slane %v68, %v72
  %v74 = vlaneseq
  %v75 = vshrl.u32 %v74, 7
  %v76 = vsub.s32 1, %v75
  %v77 = vrot.slane %v68, %v76
  %80 = vmatprep.subr.mxu0 %v37
  %81 = vmatpush1.msra.mxu0 %v36
  %82 = vmatprep.subr.mxu0 %v39
  %83 = vmatpush1.msra.mxu0 %v38
  %84 = vmatprep.subr.mxu0 %v41
  %85 = vmatpush1.msra.mxu0 %v40
  %86 = vmatprep.subr.mxu0 %v43
  %87 = vmatpush1.msra.mxu0 %v42
  %88 = vmatprep.subr.mxu0 %v45
  %89 = vmatpush1.msra.mxu0 %v44
  %90 = vmatprep.subr.mxu0 %v47
  %91 = vmatpush1.msra.mxu0 %v46
  %92 = vmatprep.subr.mxu0 %v49
  %93 = vmatpush1.msra.mxu0 %v48
  %94 = vmatprep.subr.mxu0 %v51
  %95 = vmatpush1.msra.mxu0 %v50
  %96 = vmatprep.subr.mxu0 %v53
  %97 = vmatpush1.msra.mxu0 %v52
  %98 = vmatprep.subr.mxu0 %v55
  %99 = vmatpush1.msra.mxu0 %v54
  %100 = vmatprep.subr.mxu0 %v57
  %101 = vmatpush1.msra.mxu0 %v56
  %102 = vmatprep.subr.mxu0 %v59
  %103 = vmatpush1.msra.mxu0 %v58
  %104 = vmatprep.subr.mxu0 %v61
  %105 = vmatpush1.msra.mxu0 %v60
  %106 = vmatprep.subr.mxu0 %v63
  %107 = vmatpush1.msra.mxu0 %v62
  %108 = vmatprep.subr.mxu0 %v65
  %109 = vmatpush1.msra.mxu0 %v64
  %110 = vmatprep.subr.mxu0 %v67
  %111 = vmatpush1.msra.mxu0 %v66
  %112 = vmatprep.subr.mxu0 0.0
  %113 = vmatpush1.msra.mxu0 0.0
  %114 = vmatprep.subr.mxu0 0.0
  %115 = vmatpush1.msra.mxu0 0.0
  %116 = vmatprep.subr.mxu0 0.0
  %117 = vmatpush1.msra.mxu0 0.0
  %118 = vmatprep.subr.mxu0 0.0
  %119 = vmatpush1.msra.mxu0 0.0
  %120 = vmatprep.subr.mxu0 0.0
  %121 = vmatpush1.msra.mxu0 0.0
  %122 = vmatprep.subr.mxu0 0.0
  %123 = vmatpush1.msra.mxu0 0.0
  %124 = vmatprep.subr.mxu0 0.0
  %125 = vmatpush1.msra.mxu0 0.0
  %126 = vmatprep.subr.mxu0 0.0
  %127 = vmatpush1.msra.mxu0 0.0
  %128 = vmatprep.subr.mxu0 0.0
  %129 = vmatpush1.msra.mxu0 0.0
  %130 = vmatprep.subr.mxu0 0.0
  %131 = vmatpush1.msra.mxu0 0.0
  %132 = vmatprep.subr.mxu0 0.0
  %133 = vmatpush1.msra.mxu0 0.0
  %134 = vmatprep.subr.mxu0 0.0
  %135 = vmatpush1.msra.mxu0 0.0
  %136 = vmatprep.subr.mxu0 0.0
  %137 = vmatpush1.msra.mxu0 0.0
  %138 = vmatprep.subr.mxu0 0.0
  %139 = vmatpush1.msra.mxu0 0.0
  %140 = vmatprep.subr.mxu0 0.0
  %141 = vmatpush1.msra.mxu0 0.0
  %142 = vmatprep.subr.mxu0 0.0
  %143 = vmatpush1.msra.mxu0 0.0
  %144 = vmatprep.mubr.f32.mxu0 0.0
  %145 = vmatmul.mubr.f32.gmra.mrb[0].mxu0 %v26
  %v146 = vpop.f32.mrb[0].mxu0
  %v147 = vadd.f32 %v73, %v146
  %v148 = vpop.f32.mrb[0].mxu0
  %v149 = vadd.f32 %v77, %v148
  %150 = vmatprep.mubr.f32.mxu0 0.0
  %151 = vmatmul.mubr.f32.gmra.mrb[0].mxu0 %v27
  %v152 = vpop.f32.mrb[0].mxu0
  %v153 = vadd.f32 %v73, %v152
  %v154 = vpop.f32.mrb[0].mxu0
  %v155 = vadd.f32 %v77, %v154
  %156 = vdwg.mxu0
  %157 = vadd.xlane.f32.xlu0 %v147
  %v158 = vpop.xlane.xlu0 %157
  %159 = vadd.xlane.f32.xlu0 %v153
  %v160 = vpop.xlane.xlu0 %159
  %v161 = vmul.f32 %v158, 0.03125
  %v162 = vmul.f32 %v160, 0.03125
  %v163 = vsub.f32 %v147, %v161
  %v164 = vsub.f32 %v153, %v162
  %v165 = vmul.f32 %v163, %v32
  %v166 = vmul.f32 %v164, %v32
  %v167 = vmul.f32 %v165, %v165
  %v168 = vmul.f32 %v166, %v166
  %169 = vadd.xlane.f32.xlu0 %v167
  %v170 = vpop.xlane.xlu0 %169
  %171 = vadd.xlane.f32.xlu0 %v168
  %v172 = vpop.xlane.xlu0 %171
  %v173 = vmul.f32 %v170, 0.03125
  %v174 = vmul.f32 %v172, 0.03125
  %v175 = vadd.f32 %v173, 1e-05
  %v176 = vadd.f32 %v174, 1e-05
  %v177 = vrsqrt.pop %v175
  %v178 = vrsqrt.pop %v176
  %v179 = vmul.f32 %v165, %v177
  %v180 = vmul.f32 %v166, %v178
  %v181 = vld [vmem:[%s3] sm:$0x1]
  %v183 = vlaneseq
  %v184 = vshrl.u32 %v183, 7
  %v185 = vsub.s32 0, %v184
  %v186 = vrot.slane %v181, %v185
  %v188 = vmul.f32 %v179, %v186
  %v189 = vmul.f32 %v180, %v186
  %v190 = vld [vmem:[%s4] sm:$0x1]
  %v192 = vlaneseq
  %v193 = vshrl.u32 %v192, 7
  %v194 = vsub.s32 0, %v193
  %v195 = vrot.slane %v190, %v194
  %v197 = vadd.f32 %v188, %v195
  %v198 = vadd.f32 %v189, %v195
  %v199 = vmax.f32 %v197, 0.0
  %v200 = vmax.f32 %v198, 0.0
  %v201 = vld [vmem:[%s5] sm:$0xff]
  %v202 = vld [vmem:[%s5 + $0x8] sm:$0xff]
  %v203 = vld [vmem:[%s5 + $0x10] sm:$0xff]
  %v204 = vld [vmem:[%s5 + $0x18] sm:$0xff]
  %v205 = vld [vmem:[%s5 + $0x20] sm:$0xff]
  %v206 = vld [vmem:[%s5 + $0x28] sm:$0xff]
  %v207 = vld [vmem:[%s5 + $0x30] sm:$0xff]
  %v208 = vld [vmem:[%s5 + $0x38] sm:$0xff]
  %v209 = vld [vmem:[%s5 + $0x40] sm:$0xff]
  %v210 = vld [vmem:[%s5 + $0x48] sm:$0xff]
  %v211 = vld [vmem:[%s5 + $0x50] sm:$0xff]
  %v212 = vld [vmem:[%s5 + $0x58] sm:$0xff]
  %v213 = vld [vmem:[%s5 + $0x60] sm:$0xff]
  %v214 = vld [vmem:[%s5 + $0x68] sm:$0xff]
  %v215 = vld [vmem:[%s5 + $0x70] sm:$0xff]
  %v216 = vld [vmem:[%s5 + $0x78] sm:$0xff]
  %v217 = vld [vmem:[%s6] sm:$0x1]
  %v219 = vlaneseq
  %v220 = vshrl.u32 %v219, 7
  %v221 = vsub.s32 0, %v220
  %v222 = vrot.slane %v217, %v221
  %224 = vmatprep.subr.mxu0 0.0
  %225 = vmatpush1.msra.mxu0 %v201
  %226 = vmatprep.subr.mxu0 0.0
  %227 = vmatpush1.msra.mxu0 %v202
  %228 = vmatprep.subr.mxu0 0.0
  %229 = vmatpush1.msra.mxu0 %v203
  %230 = vmatprep.subr.mxu0 0.0
  %231 = vmatpush1.msra.mxu0 %v204
  %232 = vmatprep.subr.mxu0 0.0
  %233 = vmatpush1.msra.mxu0 %v205
  %234 = vmatprep.subr.mxu0 0.0
  %235 = vmatpush1.msra.mxu0 %v206
  %236 = vmatprep.subr.mxu0 0.0
  %237 = vmatpush1.msra.mxu0 %v207
  %238 = vmatprep.subr.mxu0 0.0
  %239 = vmatpush1.msra.mxu0 %v208
  %240 = vmatprep.subr.mxu0 0.0
  %241 = vmatpush1.msra.mxu0 %v209
  %242 = vmatprep.subr.mxu0 0.0
  %243 = vmatpush1.msra.mxu0 %v210
  %244 = vmatprep.subr.mxu0 0.0
  %245 = vmatpush1.msra.mxu0 %v211
  %246 = vmatprep.subr.mxu0 0.0
  %247 = vmatpush1.msra.mxu0 %v212
  %248 = vmatprep.subr.mxu0 0.0
  %249 = vmatpush1.msra.mxu0 %v213
  %250 = vmatprep.subr.mxu0 0.0
  %251 = vmatpush1.msra.mxu0 %v214
  %252 = vmatprep.subr.mxu0 0.0
  %253 = vmatpush1.msra.mxu0 %v215
  %254 = vmatprep.subr.mxu0 0.0
  %255 = vmatpush1.msra.mxu0 %v216
  %256 = vmatprep.subr.mxu0 0.0
  %257 = vmatpush1.msra.mxu0 0.0
  %258 = vmatprep.subr.mxu0 0.0
  %259 = vmatpush1.msra.mxu0 0.0
  %260 = vmatprep.subr.mxu0 0.0
  %261 = vmatpush1.msra.mxu0 0.0
  %262 = vmatprep.subr.mxu0 0.0
  %263 = vmatpush1.msra.mxu0 0.0
  %264 = vmatprep.subr.mxu0 0.0
  %265 = vmatpush1.msra.mxu0 0.0
  %266 = vmatprep.subr.mxu0 0.0
  %267 = vmatpush1.msra.mxu0 0.0
  %268 = vmatprep.subr.mxu0 0.0
  %269 = vmatpush1.msra.mxu0 0.0
  %270 = vmatprep.subr.mxu0 0.0
  %271 = vmatpush1.msra.mxu0 0.0
  %272 = vmatprep.subr.mxu0 0.0
  %273 = vmatpush1.msra.mxu0 0.0
  %274 = vmatprep.subr.mxu0 0.0
  %275 = vmatpush1.msra.mxu0 0.0
  %276 = vmatprep.subr.mxu0 0.0
  %277 = vmatpush1.msra.mxu0 0.0
  %278 = vmatprep.subr.mxu0 0.0
  %279 = vmatpush1.msra.mxu0 0.0
  %280 = vmatprep.subr.mxu0 0.0
  %281 = vmatpush1.msra.mxu0 0.0
  %282 = vmatprep.subr.mxu0 0.0
  %283 = vmatpush1.msra.mxu0 0.0
  %284 = vmatprep.subr.mxu0 0.0
  %285 = vmatpush1.msra.mxu0 0.0
  %286 = vmatprep.subr.mxu0 0.0
  %287 = vmatpush1.msra.mxu0 0.0
  %288 = vmatprep.mubr.f32.mxu0 0.0
  %289 = vmatmul.mubr.f32.gmra.mrb[0].mxu0 %v199
  %v290 = vpop.f32.mrb[0].mxu0
  %v291 = vadd.f32 %v222, %v290
  %v292 = vpop.f32.mrb[0].mxu0
  %293 = vmatprep.mubr.f32.mxu0 0.0
  %294 = vmatmul.mubr.f32.gmra.mrb[0].mxu0 %v200
  %v295 = vpop.f32.mrb[0].mxu0
  %v296 = vadd.f32 %v222, %v295
  %v297 = vpop.f32.mrb[0].mxu0
  %298 = vdwg.mxu0
  %v299 = vxor.u32 %v149, 2147483648
  %v300 = vxor.u32 %v155, 2147483648
  %v301 = vmul.f32 %v299, 1.442695
  %v302 = vpow.pop %v301
  %v303 = vmul.f32 %v300, 1.442695
  %v304 = vpow.pop %v303
  %v305 = vadd.f32 %v302, 1.0
  %v306 = vadd.f32 %v304, 1.0
  %v307 = vrcp.pop %v305
  %v308 = vmul.f32 1.0, %v307
  %v309 = vrcp.pop %v306
  %v310 = vmul.f32 1.0, %v309
  %v311 = vmul.f32 %v26, %v35
  %v312 = vmul.f32 %v27, %v35
  %313 = vadd.xlane.f32.xlu0 %v311
  %v314 = vpop.xlane.xlu0 %313
  %315 = vadd.xlane.f32.xlu0 %v312
  %v316 = vpop.xlane.xlu0 %315
  %v317 = vmul.f32 %v308, %v314
  %v318 = vmul.f32 %v310, %v316
  %v319 = vsub.f32 1.0, %v308
  %v320 = vsub.f32 1.0, %v310
  %v321 = vmul.f32 %v319, %v291
  %v322 = vmul.f32 %v320, %v296
  %v323 = vadd.f32 %v317, %v321
  %v324 = vadd.f32 %v318, %v322
  %325 = vst [vmem:[%s7] sm:$0xff] %v323
  %326 = vst [vmem:[%s7 + $0x8] sm:$0xff] %v324
  // Predicated region
  $region30: #{pprm_forward.1} parent=0 // pred_check
    _
  $region31: #{pprm_forward.1} parent=0 // pred_check_branch
    %328 = sbr.rel (0) target = $region33
  $region32: #{pprm_forward.1} parent=0 // pred_region
    _
  $region33: #{pprm_forward.1} parent=0 // pred_fallthru
    _
  // Predicated region
  $region34: #{pprm_forward.1} parent=0 // pred_check
    _
  $region35: #{pprm_forward.1} parent=0 // pred_check_branch
    %330 = sbr.rel (0) target = $region37
  $region36: #{pprm_forward.1} parent=0 // pred_region
    _
  $region37: #{pprm_forward.1} parent=0 // pred_fallthru
    _

</llo_original>
